<compile_context>
chip_gen: v6e
topology: v6e:2x2x1
jax: 0.10.0
libtpu: 0.0.40
codegen_flags: <defaults>
</compile_context>

<pallas_src>
import functools

import jax
import jax.numpy as jnp
from jax.experimental import pallas as pl
from jax.experimental.pallas import tpu as pltpu


def _rmsnorm_kernel(x_ref, w_ref, o_ref, *, eps):
    # x_ref: (TM, H) block of hidden states (input dtype, e.g. bf16)
    # w_ref: (1, H) weight row, already in the output dtype
    # o_ref: (TM, H) output block
    x_f32 = x_ref[...].astype(jnp.float32)
    # variance = mean(x^2) in float32, keepdims over the last (lane) axis
    variance = jnp.mean(x_f32 * x_f32, axis=-1, keepdims=True)
    inv_rms = jax.lax.rsqrt(variance + eps)
    # torch: (x * rsqrt) promotes to f32; cast to weight dtype (when weight
    # is fp16/bf16) happens before the weight multiply.
    hs = (x_f32 * inv_rms).astype(o_ref.dtype)
    o_ref[...] = w_ref[...] * hs


def _choose_row_tile(rows, H, in_bytes, out_bytes, vmem_budget_bytes):
    """Largest row tile whose double-buffered in+out tiles fit the budget."""
    per_row = 2 * (in_bytes + out_bytes) * H  # double-buffered in + out
    tm = max(int(vmem_budget_bytes // max(per_row, 1)), 8)
    tm = min(tm, 1024, rows)

    # Keep tiles sublane-aligned: mult. of 16 when a sub-32-bit dtype is
    # involved (full sublane packing), otherwise mult. of 8.
    align = 16 if min(in_bytes, out_bytes) < 4 else 8
    if tm >= align:
        tm -= tm % align
    tm = max(tm, 1)

    # Keep a few grid blocks so the parallel grid axis can feed both v7x TCs.
    while tm > 64 and pl.cdiv(rows, tm) < 4:
        tm //= 2
        if tm >= align:
            tm -= tm % align
    return tm


def rmsnorm(hidden_states, weight, eps=1e-6, *, block_rows=None):
    """RMSNorm forward. hidden_states: (..., H); weight: (H,)."""
    orig_shape = hidden_states.shape
    H = orig_shape[-1]
    x2d = hidden_states.reshape(-1, H)
    rows = x2d.shape[0]

    # Output dtype follows the PyTorch semantics:
    #   hs is cast to weight.dtype if weight is fp16/bf16, else stays f32;
    #   result = weight * hs.
    if weight.dtype in (jnp.float16, jnp.bfloat16):
        out_dtype = weight.dtype
    else:
        out_dtype = jnp.float32

    # Normalize the weight dtype once in the wrapper (no per-step cast).
    w2d = weight.reshape(1, H).astype(out_dtype)

    in_bytes = jnp.dtype(x2d.dtype).itemsize
    out_bytes = jnp.dtype(out_dtype).itemsize
    w_bytes = jnp.dtype(out_dtype).itemsize

    # ~48 MiB pipeline budget: big enough to hit the HBM roofline plateau,
    # small enough to fit v7x's 64 MiB physical VMEM.
    VMEM_PIPELINE_BUDGET = 48 * 1024 * 1024
    if block_rows is None:
        tm = _choose_row_tile(rows, H, in_bytes, out_bytes, VMEM_PIPELINE_BUDGET)
    else:
        tm = max(min(block_rows, rows), 1)

    grid = (pl.cdiv(rows, tm),)  # partial boundary block is masked by Pallas

    # Explicit VMEM limit: double-buffered in/out tiles + weight + slack,
    # capped below v7x physical VMEM.
    pipeline_bytes = 2 * tm * H * (in_bytes + out_bytes) + 2 * H * w_bytes
    vmem_limit = min(pipeline_bytes + 4 * 1024 * 1024, 60 * 1024 * 1024)

    kernel = functools.partial(_rmsnorm_kernel, eps=eps)

    cost = pl.CostEstimate(
        flops=4 * rows * H,
        transcendentals=rows,
        bytes_accessed=rows * H * (in_bytes + out_bytes) + H * w_bytes,
    )

    out = pl.pallas_call(
        kernel,
        out_shape=jax.ShapeDtypeStruct((rows, H), out_dtype),
        grid_spec=pltpu.PrefetchScalarGridSpec(
            num_scalar_prefetch=0,
            grid=grid,
            in_specs=[
                pl.BlockSpec((tm, H), lambda i: (i, 0)),
                pl.BlockSpec((1, H), lambda i: (0, 0)),
            ],
            out_specs=pl.BlockSpec((tm, H), lambda i: (i, 0)),
        ),
        compiler_params=pltpu.CompilerParams(
            dimension_semantics=("parallel",),
            vmem_limit_bytes=int(vmem_limit),
        ),
        cost_estimate=cost,
    )(x2d, w2d)

    return out.reshape(orig_shape[:-1] + (H,))


def rmsnorm_ref(hidden_states, weight, eps=1e-6):
    """Pure-JAX reference mirroring the PyTorch forward exactly."""
    variance = jnp.mean(
        hidden_states.astype(jnp.float32) ** 2, axis=-1, keepdims=True
    )
    hs = hidden_states.astype(jnp.float32) * jax.lax.rsqrt(variance + eps)
    if weight.dtype in (jnp.float16, jnp.bfloat16):
        hs = hs.astype(weight.dtype)
    return weight * hs


if __name__ == "__main__":
    key = jax.random.PRNGKey(0)
    batch, seq, hidden = 2, 8, 32

    kx, _ = jax.random.split(key)
    x = jax.random.normal(kx, (batch, seq, hidden), dtype=jnp.float32).astype(
        jnp.bfloat16
    )
    # Module init: weight = ones(hidden_size); use bf16 weight (typical usage).
    weight = jnp.ones((hidden,), dtype=jnp.bfloat16)

    out = rmsnorm(x, weight, eps=1e-6)
    out = jax.block_until_ready(out)

    ref = rmsnorm_ref(x, weight, eps=1e-6)
    assert out.shape == ref.shape and out.dtype == ref.dtype
    diff = jnp.max(
        jnp.abs(out.astype(jnp.float32) - ref.astype(jnp.float32))
    )
    assert float(diff) < 1e-2, f"mismatch: {float(diff)}"

    # Also exercise a non-divisible row count with a production-like H
    # (multiple of 128) to check the cdiv/masked boundary path.
    x2 = jax.random.normal(key, (3, 37, 256), dtype=jnp.float32).astype(
        jnp.bfloat16
    )
    w2 = (1.0 + 0.01 * jax.random.normal(key, (256,), jnp.float32)).astype(
        jnp.bfloat16
    )
    out2 = jax.block_until_ready(rmsnorm(x2, w2, eps=1e-6))
    ref2 = rmsnorm_ref(x2, w2, eps=1e-6)
    diff2 = jnp.max(
        jnp.abs(out2.astype(jnp.float32) - ref2.astype(jnp.float32))
    )
    assert float(diff2) < 1e-2, f"mismatch (ragged): {float(diff2)}"

    # Float32-weight path (PyTorch skips the bf16 cast -> f32 output).
    w3 = jnp.ones((hidden,), dtype=jnp.float32)
    out3 = jax.block_until_ready(rmsnorm(x, w3, eps=1e-6))
    ref3 = rmsnorm_ref(x, w3, eps=1e-6)
    assert out3.dtype == ref3.dtype
    diff3 = jnp.max(jnp.abs(out3 - ref3))
    assert float(diff3) < 1e-2, f"mismatch (f32 weight): {float(diff3)}"

    print("KERNEL_OK")
</pallas_src>

<mosaic_0001>
module attributes {stable_mosaic.version = 11 : i64} {
  func.func @_rmsnorm_kernel(%arg0: i32, %arg1: memref<16x32xbf16, #tpu.memory_space<vmem>>, %arg2: memref<1x32xbf16, #tpu.memory_space<vmem>>, %arg3: memref<16x32xbf16, #tpu.memory_space<vmem>>) attributes {dimension_semantics = [#tpu.dimension_semantics<parallel>], iteration_bounds = array<i64: 1>, scalar_prefetch = 0 : i64, scratch_operands = 0 : i64, tpu.core_type = #tpu.core_type<tc>, window_params = [{transform_indices = @transform_0, window_bounds = array<i64: 16, 32>}, {pipeline_mode = #tpu.pipeline_mode<synchronous>, transform_indices = @transform_1, window_bounds = array<i64: 1, 32>}, {transform_indices = @transform_2, window_bounds = array<i64: 16, 32>}]} {
    %c0 = arith.constant 0 : index
    %c0_0 = arith.constant 0 : index
    %0 = vector.load %arg1[%c0, %c0_0] : memref<16x32xbf16, #tpu.memory_space<vmem>>, vector<16x32xbf16>
    %1 = arith.extf %0 : vector<16x32xbf16> to vector<16x32xf32>
    %2 = arith.mulf %1, %1 : vector<16x32xf32>
    %cst = arith.constant dense<0.000000e+00> : vector<16xf32>
    %3 = vector.multi_reduction <add>, %2, %cst [1] : vector<16x32xf32> to vector<16xf32>
    %4 = vector.shape_cast %3 : vector<16xf32> to vector<16x1xf32>
    %cst_1 = arith.constant 3.200000e+01 : f32
    %5 = vector.broadcast %cst_1 : f32 to vector<16x1xf32>
    %6 = arith.divf %4, %5 : vector<16x1xf32>
    %cst_2 = arith.constant 9.99999997E-7 : f32
    %7 = vector.broadcast %cst_2 : f32 to vector<16x1xf32>
    %8 = arith.addf %6, %7 : vector<16x1xf32>
    %9 = math.rsqrt %8 : vector<16x1xf32>
    %10 = vector.broadcast %9 : vector<16x1xf32> to vector<16x32xf32>
    %11 = arith.mulf %1, %10 : vector<16x32xf32>
    %12 = arith.truncf %11 : vector<16x32xf32> to vector<16x32xbf16>
    %c0_3 = arith.constant 0 : index
    %c0_4 = arith.constant 0 : index
    %13 = vector.load %arg2[%c0_3, %c0_4] : memref<1x32xbf16, #tpu.memory_space<vmem>>, vector<1x32xbf16>
    %14 = vector.broadcast %13 : vector<1x32xbf16> to vector<16x32xbf16>
    %15 = arith.mulf %14, %12 : vector<16x32xbf16>
    %c0_5 = arith.constant 0 : index
    %c0_6 = arith.constant 0 : index
    %16 = vector.load %arg3[%c0_5, %c0_6] : memref<16x32xbf16, #tpu.memory_space<vmem>>, vector<16x32xbf16>
    tpu.vector_store %arg3[%c0_5, %c0_6], %15 {strides = array<i32>} : memref<16x32xbf16, #tpu.memory_space<vmem>>, vector<16x32xbf16>,
    return
  }
  func.func @transform_0(%arg0: i32) -> (i32, i32) {
    %c0_i32 = arith.constant 0 : i32
    %c0_i32_0 = arith.constant 0 : i32
    return %arg0, %c0_i32 : i32, i32
  }
  func.func @transform_1(%arg0: i32) -> (i32, i32) {
    %c0_i32 = arith.constant 0 : i32
    %c0_i32_0 = arith.constant 0 : i32
    %c0_i32_1 = arith.constant 0 : i32
    return %c0_i32, %c0_i32_0 : i32, i32
  }
  func.func @transform_2(%arg0: i32) -> (i32, i32) {
    %c0_i32 = arith.constant 0 : i32
    %c0_i32_0 = arith.constant 0 : i32
    return %arg0, %c0_i32 : i32, i32
  }
}

</mosaic_0001>

<llo_original>
// kernel: tpu_custom_call.1
$region0: #{tpu_custom_call.1}
  #allocation0 [shape = 'u32[]', space=smem, size = 0x4, offset = 0x4, fixed_abs, tag = 'smem constant byte address 0x4 - core index']
  #allocation1 [shape = 'u32[144,128]{1,0:T(1,128)}', space=vmem, size = 0x12000, scoped, tag = 'internal scratch']
  %s0 = inlined_call_operand.hbm [shape: bf16[16,32], index: 0, kind: input, shape index: {}]
  %s1 = inlined_call_operand.vmem [shape: bf16[1,32], index: 1, kind: input, shape index: {}]
  %s2 = inlined_call_operand.hbm [shape: bf16[16,32], index: 2, kind: output, shape index: {}]
  %s3 = sld [smem:[#allocation0]]
  $region22: #{tpu_custom_call.1} parent=0
    _
  %s5 = ssub.s32 1, %s3
  %s6 = scalar_select 0, %s5, %s3
  $region1: #{tpu_custom_call.1} parent=0
    #allocation2 [shape = 'u8[4096]{0}', space=vmem, size = 0x1000, scoped, tag = 'input window, operand 0, single buffered']
    #allocation3 [shape = 's32[1]{0}', space=sflag, size = 0x4, scoped, tag = 'scoped memory for tpu_custom_call.1']
    #allocation4 [shape = 's32[1]{0}', space=sflag, size = 0x4, scoped, tag = 'scoped memory for tpu_custom_call.1']
    #allocation5 [shape = 'u8[4096]{0}', space=vmem, size = 0x1000, scoped, tag = 'output window, operand 0, single buffered']
    %7 = vsyncpa [#allocation3], 0
    %8 = vsyncpa [#allocation4], 0
    // Predicated region
    $region2: #{tpu_custom_call.1} parent=1 // pred_check
      _
    $region3: #{tpu_custom_call.1} parent=1 // pred_check_branch
      %10 = sbr.rel (0) target = $region5
    $region4: #{tpu_custom_call.1} parent=1 // pred_region
      %s12 = ssub.s32 128, 128
      %13 = vsyncadd [#allocation3], %s12
      %s14 = sshll.u32 [#allocation2], 4
      %s15 = int_to_ptr.vmem [resolvable:$true] %s14
      %20 = dma.hbm_to_vmem [thread:$0]  %s0, 128, %s15, [#allocation3], 64, 64, 4
    $region5: #{tpu_custom_call.1} parent=1 // pred_fallthru
      _
    // Predicated region
    $region6: #{tpu_custom_call.1} parent=1 // pred_check
      _
    $region7: #{tpu_custom_call.1} parent=1 // pred_check_branch
      %22 = sbr.rel (0) target = $region9
    $region8: #{tpu_custom_call.1} parent=1 // pred_region
      _
    $region9: #{tpu_custom_call.1} parent=1 // pred_fallthru
      _
    // Predicated region
    $region10: #{tpu_custom_call.1} parent=1 // pred_check
      _
    $region11: #{tpu_custom_call.1} parent=1 // pred_check_branch
      %24 = sbr.rel (0) target = $region13
    $region12: #{tpu_custom_call.1} parent=1 // pred_region
      %25 = dma.done [#allocation3], 128
    $region13: #{tpu_custom_call.1} parent=1 // pred_fallthru
      _
    %v26 = vld [vmem:[#allocation2] sm:$0xf]
    %v27 = vld [vmem:[#allocation2 + $0x4] sm:$0xf]
    %v28 = vunpack.c.l.bf16 %v26
    %v29 = vunpack.c.l.bf16 %v27
    %v30 = vmul.f32 %v28, %v28
    %v31 = vmul.f32 %v29, %v29
    %vm32 = vcmask 261120
    %v33 = vsel %vm32, %v30, 0.0
    %34 = vadd.xlane.f32.xlu0 %v33
    %v35 = vpop.xlane.xlu0 %34
    %v36 = vsel %vm32, %v31, 0.0
    %37 = vadd.xlane.f32.xlu0 %v36
    %v38 = vpop.xlane.xlu0 %37
    %v39 = vrcp.pop 32.0
    %v40 = vmul.f32 %v35, %v39
    %v41 = vmul.f32 %v38, %v39
    %v42 = vadd.f32 %v40, 1e-06
    %v43 = vadd.f32 %v41, 1e-06
    %v44 = vrsqrt.pop %v42
    %v45 = vrsqrt.pop %v43
    %v46 = vmul.f32 %v28, %v44
    %v47 = vmul.f32 %v29, %v45
    %v48 = vpack.c.bf16 %v47, %v46
    %v49 = vld [vmem:[%s1] sm:$0x1]
    %v51 = vpack.i.b16 %v49, %v49
    %v53 = vlaneseq
    %v54 = vshrl.u32 %v53, 7
    %v55 = vsub.s32 0, %v54
    %v56 = vrot.slane %v51, %v55
    %v57 = vmul.bf16 %v56, %v48
    %v59 = vunpack.c.l.b16 %v57
    %v60 = vunpack.c.h.b16 %v57
    %v61 = vpack.c.b16 %v59, %v59
    %v62 = vpack.c.b16 %v60, %v60
    %vm65 = vcmask 257024
    %66 = vst.msk [vmem:[#allocation5] sm:$0xf] %vm65, %v61
    %67 = vst.msk [vmem:[#allocation5 + $0x4] sm:$0xf] %vm65, %v62
    // Predicated region
    $region14: #{tpu_custom_call.1} parent=1 // pred_check
      _
    $region15: #{tpu_custom_call.1} parent=1 // pred_check_branch
      %69 = sbr.rel (0) target = $region17
    $region16: #{tpu_custom_call.1} parent=1 // pred_region
      %s71 = ssub.s32 128, 128
      %72 = vsyncadd [#allocation4], %s71
      %s73 = sshll.u32 [#allocation5], 4
      %s74 = int_to_ptr.vmem [resolvable:$true] %s73
      %79 = dma.vmem_to_hbm [thread:$0]  %s74, 128, %s2, [#allocation4], 64, 64, 4
    $region17: #{tpu_custom_call.1} parent=1 // pred_fallthru
      _
    // Predicated region
    $region18: #{tpu_custom_call.1} parent=1 // pred_check
      _
    $region19: #{tpu_custom_call.1} parent=1 // pred_check_branch
      %81 = sbr.rel (0) target = $region21
    $region20: #{tpu_custom_call.1} parent=1 // pred_region
      %82 = dma.done [#allocation4], 128
    $region21: #{tpu_custom_call.1} parent=1 // pred_fallthru
      _
    %83 = vsyncpa [#allocation3], 1
    %84 = vsyncpa [#allocation4], 1

</llo_original>
